<compile_context>
chip_gen: v5e
topology: v5e:2x2
jax: 0.10.0
libtpu: 0.0.40
codegen_flags: <defaults>
</compile_context>

<pallas_src>
import functools

import jax
import jax.numpy as jnp
from jax import lax
from jax.experimental import pallas as pl
from jax.experimental.pallas import tpu as pltpu


# ---------------------------------------------------------------------------
# Tiling helpers
# ---------------------------------------------------------------------------
def _pick_tile(dim, max_tile, align):
    """Largest multiple of `align` that divides `dim` and is <= max_tile.

    Falls back to the full dimension (always legal: a block equal to the full
    array extent satisfies the (8, 128) constraint) if no aligned divisor
    exists.
    """
    if dim <= max_tile:
        return dim
    t = (max_tile // align) * align
    while t >= align:
        if dim % t == 0:
            return t
        t -= align
    return dim


def _vmem_limit(tile_bytes):
    """Scoped-VMEM budget from the tile footprint plus headroom, clamped to
    stay well inside v7x's 64 MiB physical VMEM."""
    return int(min(max(tile_bytes + 8 * 2**20, 16 * 2**20), 48 * 2**20))


# ---------------------------------------------------------------------------
# Gram matrix kernel:  G = (F @ F.T) / (a*b*c*d),  F = features (a*b, c*d)
# ---------------------------------------------------------------------------
def _gram_kernel(lhs_ref, rhs_ref, g_ref, acc_ref, *, inv_scale):
    k = pl.program_id(1)

    @pl.when(k == 0)
    def _():
        acc_ref[...] = jnp.zeros_like(acc_ref)

    # (TM, TK) x (N, TK) contracting on K -> (TM, N) partial Gram.
    # dot_general with contracting dims (1, 1) absorbs the transpose into the
    # MXU operand mapping; native-dtype operands, f32 accumulation.
    acc_ref[...] += lax.dot_general(
        lhs_ref[...],
        rhs_ref[...],
        dimension_numbers=(((1,), (1,)), ((), ())),
        preferred_element_type=jnp.float32,
    )

    @pl.when(k == pl.num_programs(1) - 1)
    def _():
        g_ref[...] = (acc_ref[...] * inv_scale).astype(g_ref.dtype)


def gram_matrix(x, *, max_tm=256, max_tk=2048):
    """x: (a, b, c, d) NCHW feature tensor -> (a*b, a*b) float32 Gram matrix."""
    a, b, c, d = x.shape
    n, k_dim = a * b, c * d
    feats = x.reshape(n, k_dim)
    inv_scale = 1.0 / float(a * b * c * d)

    tm = _pick_tile(n, max_tm, 8)        # output-row tile (parallel axis)
    tk = _pick_tile(k_dim, max_tk, 128)  # contraction tile (reduction axis)
    grid = (n // tm, k_dim // tk)

    itemsize = feats.dtype.itemsize
    tile_bytes = (
        2 * tm * tk * itemsize   # lhs row tile, double buffered
        + 2 * n * tk * itemsize  # rhs (all rows) K tile, double buffered
        + 2 * tm * n * 4         # output tile, double buffered
        + tm * n * 4             # f32 accumulator scratch
    )

    return pl.pallas_call(
        functools.partial(_gram_kernel, inv_scale=inv_scale),
        out_shape=jax.ShapeDtypeStruct((n, n), jnp.float32),
        grid_spec=pltpu.PrefetchScalarGridSpec(
            num_scalar_prefetch=0,
            grid=grid,
            in_specs=[
                pl.BlockSpec((tm, tk), lambda m, kk: (m, kk)),  # row tile of F
                pl.BlockSpec((n, tk), lambda m, kk: (0, kk)),   # all rows of F
            ],
            out_specs=pl.BlockSpec((tm, n), lambda m, kk: (m, 0)),
            scratch_shapes=[pltpu.VMEM((tm, n), jnp.float32)],
        ),
        compiler_params=pltpu.CompilerParams(
            dimension_semantics=("parallel", "arbitrary"),
            vmem_limit_bytes=_vmem_limit(tile_bytes),
        ),
    )(feats, feats)


# ---------------------------------------------------------------------------
# MSE kernel:  loss = mean((x - target)^2), tiled over rows, scalar in SMEM
# ---------------------------------------------------------------------------
def _mse_kernel(x_ref, t_ref, loss_ref, acc_ref, *, inv_n):
    r = pl.program_id(0)

    @pl.when(r == 0)
    def _():
        acc_ref[0] = jnp.float32(0.0)

    diff = x_ref[...].astype(jnp.float32) - t_ref[...].astype(jnp.float32)
    acc_ref[0] += jnp.sum(diff * diff)

    @pl.when(r == pl.num_programs(0) - 1)
    def _():
        loss_ref[0, 0] = acc_ref[0] * inv_n


def mse_loss(x, target, *, max_rows=512):
    assert x.shape == target.shape, (x.shape, target.shape)
    assert x.ndim == 2, x.shape
    rows, cols = x.shape
    inv_n = 1.0 / float(x.size)

    tr = _pick_tile(rows, max_rows, 8)
    grid = (rows // tr,)

    itemsize = max(x.dtype.itemsize, target.dtype.itemsize)
    tile_bytes = 2 * 2 * tr * cols * itemsize  # two inputs, double buffered

    out = pl.pallas_call(
        functools.partial(_mse_kernel, inv_n=inv_n),
        out_shape=jax.ShapeDtypeStruct((1, 1), jnp.float32),
        grid_spec=pltpu.PrefetchScalarGridSpec(
            num_scalar_prefetch=0,
            grid=grid,
            in_specs=[
                pl.BlockSpec((tr, cols), lambda r: (r, 0)),
                pl.BlockSpec((tr, cols), lambda r: (r, 0)),
            ],
            out_specs=pl.BlockSpec(memory_space=pltpu.SMEM),
            scratch_shapes=[pltpu.SMEM((1,), jnp.float32)],
        ),
        compiler_params=pltpu.CompilerParams(
            dimension_semantics=("arbitrary",),
            vmem_limit_bytes=_vmem_limit(tile_bytes),
        ),
    )(x, target)
    return out[0, 0]


# ---------------------------------------------------------------------------
# StyleLoss module (forward semantics identical to the PyTorch module:
# stores loss as a side effect, returns the input unchanged).
# ---------------------------------------------------------------------------
class StyleLoss:
    def __init__(self, target):
        # target: (a, b, c, d) NCHW feature tensor.
        self.target = jax.lax.stop_gradient(gram_matrix(target))
        self.loss = None

    def __call__(self, i):
        # Matches nn.functional.mse_loss(i, self.target): `i` is Gram-shaped.
        self.loss = mse_loss(i, self.target)
        return i


if __name__ == "__main__":
    key = jax.random.PRNGKey(0)
    k_t, k_i = jax.random.split(key)

    # Small shapes consistent with the module: NCHW target features.
    a, b, c, d = 2, 4, 16, 16
    target_feats = jax.random.normal(k_t, (a, b, c, d), dtype=jnp.float32)

    module = StyleLoss(target_feats)

    # Forward input has the same shape as the stored Gram target: (a*b, a*b).
    i = jax.random.normal(k_i, (a * b, a * b), dtype=jnp.float32)

    out = jax.block_until_ready(module(i))
    loss = jax.block_until_ready(module.loss)

    # Pure-JAX reference.
    feats = target_feats.reshape(a * b, c * d)
    g_ref = (feats @ feats.T) / float(a * b * c * d)
    loss_ref = jnp.mean((i - g_ref) ** 2)

    assert jnp.allclose(out, i), "forward must return the input unchanged"
    assert jnp.allclose(module.target, g_ref, rtol=1e-5, atol=1e-5)
    assert jnp.allclose(loss, loss_ref, rtol=1e-5, atol=1e-5), (loss, loss_ref)

    # Explicitly exercise the tiled / accumulating K path (K=256 -> 2 tiles).
    g_tiled = jax.block_until_ready(gram_matrix(target_feats, max_tk=128))
    assert jnp.allclose(g_tiled, g_ref, rtol=1e-5, atol=1e-5)

    print("KERNEL_OK")
</pallas_src>

<mosaic_0001>
module attributes {stable_mosaic.version = 11 : i64} {
  func.func @_gram_kernel(%arg0: i32, %arg1: i32, %arg2: memref<8x256xf32, #tpu.memory_space<vmem>>, %arg3: memref<8x256xf32, #tpu.memory_space<vmem>>, %arg4: memref<8x8xf32, #tpu.memory_space<vmem>>, %arg5: memref<8x8xf32, #tpu.memory_space<vmem>>) attributes {dimension_semantics = [#tpu.dimension_semantics<parallel>, #tpu.dimension_semantics<arbitrary>], iteration_bounds = array<i64: 1, 1>, scalar_prefetch = 0 : i64, scratch_operands = 1 : i64, tpu.core_type = #tpu.core_type<tc>, window_params = [{transform_indices = @transform_0, window_bounds = array<i64: 8, 256>}, {transform_indices = @transform_1, window_bounds = array<i64: 8, 256>}, {transform_indices = @transform_2, window_bounds = array<i64: 8, 8>}]} {
    %c0_i32 = arith.constant 0 : i32
    %0 = arith.cmpi eq, %arg1, %c0_i32 : i32
    %1 = arith.extui %0 : i1 to i32
    %c0_i32_0 = arith.constant 0 : i32
    %2 = arith.cmpi ne, %1, %c0_i32_0 : i32
    scf.if %2 {
      %cst_10 = arith.constant 0.000000e+00 : f32
      %12 = vector.broadcast %cst_10 : f32 to vector<8x8xf32>
      %c0_11 = arith.constant 0 : index
      %c0_12 = arith.constant 0 : index
      %13 = vector.load %arg5[%c0_11, %c0_12] : memref<8x8xf32, #tpu.memory_space<vmem>>, vector<8x8xf32>
      tpu.vector_store %arg5[%c0_11, %c0_12], %12 {strides = array<i32>} : memref<8x8xf32, #tpu.memory_space<vmem>>, vector<8x8xf32>,
    } else {
    }
    %c0 = arith.constant 0 : index
    %c0_1 = arith.constant 0 : index
    %3 = vector.load %arg5[%c0, %c0_1] : memref<8x8xf32, #tpu.memory_space<vmem>>, vector<8x8xf32>
    %c0_2 = arith.constant 0 : index
    %c0_3 = arith.constant 0 : index
    %4 = vector.load %arg2[%c0_2, %c0_3] : memref<8x256xf32, #tpu.memory_space<vmem>>, vector<8x256xf32>
    %c0_4 = arith.constant 0 : index
    %c0_5 = arith.constant 0 : index
    %5 = vector.load %arg3[%c0_4, %c0_5] : memref<8x256xf32, #tpu.memory_space<vmem>>, vector<8x256xf32>
    %cst = arith.constant dense<0.000000e+00> : vector<8x8xf32>
    %6 = tpu.matmul %4, %5, %cst {dimension_numbers = #tpu.dot_dimension_numbers<[1], [1], [0], [0], [0, 0, 1, 0], [], []>} : vector<8x256xf32>, vector<8x256xf32>, vector<8x8xf32> -> vector<8x8xf32>
    %7 = arith.addf %3, %6 : vector<8x8xf32>
    %c0_6 = arith.constant 0 : index
    %c0_7 = arith.constant 0 : index
    %8 = vector.load %arg5[%c0_6, %c0_7] : memref<8x8xf32, #tpu.memory_space<vmem>>, vector<8x8xf32>
    tpu.vector_store %arg5[%c0_6, %c0_7], %7 {strides = array<i32>} : memref<8x8xf32, #tpu.memory_space<vmem>>, vector<8x8xf32>,
    %c0_i32_8 = arith.constant 0 : i32
    %9 = arith.cmpi eq, %arg1, %c0_i32_8 : i32
    %10 = arith.extui %9 : i1 to i32
    %c0_i32_9 = arith.constant 0 : i32
    %11 = arith.cmpi ne, %10, %c0_i32_9 : i32
    scf.if %11 {
      %c0_10 = arith.constant 0 : index
      %c0_11 = arith.constant 0 : index
      %12 = vector.load %arg5[%c0_10, %c0_11] : memref<8x8xf32, #tpu.memory_space<vmem>>, vector<8x8xf32>
      %cst_12 = arith.constant 4.8828125E-4 : f32
      %13 = vector.broadcast %cst_12 : f32 to vector<8x8xf32>
      %14 = arith.mulf %12, %13 : vector<8x8xf32>
      %c0_13 = arith.constant 0 : index
      %c0_14 = arith.constant 0 : index
      %15 = vector.load %arg4[%c0_13, %c0_14] : memref<8x8xf32, #tpu.memory_space<vmem>>, vector<8x8xf32>
      tpu.vector_store %arg4[%c0_13, %c0_14], %14 {strides = array<i32>} : memref<8x8xf32, #tpu.memory_space<vmem>>, vector<8x8xf32>,
    } else {
    }
    return
  }
  func.func @transform_0(%arg0: i32, %arg1: i32) -> (i32, i32) {
    %c0_i32 = arith.constant 0 : i32
    return %arg0, %arg1 : i32, i32
  }
  func.func @transform_1(%arg0: i32, %arg1: i32) -> (i32, i32) {
    %c0_i32 = arith.constant 0 : i32
    %c0_i32_0 = arith.constant 0 : i32
    return %c0_i32, %arg1 : i32, i32
  }
  func.func @transform_2(%arg0: i32, %arg1: i32) -> (i32, i32) {
    %c0_i32 = arith.constant 0 : i32
    %c0_i32_0 = arith.constant 0 : i32
    return %arg0, %c0_i32 : i32, i32
  }
}

</mosaic_0001>

<llo_original>
// kernel: tpu_custom_call.1
$region0: #{tpu_custom_call.1}
  #allocation0 [shape = 'u32[]', space=smem, size = 0x4, offset = 0x4, fixed_abs, tag = 'smem constant byte address 0x4 - core index']
  #allocation1 [shape = 'u32[72,128]{1,0:T(1,128)}', space=vmem, size = 0x9000, scoped, tag = 'internal scratch']
  #allocation2 [shape = 'f32[8,8]{1,0:T(8,128)}', space=vmem, size = 0x1000, scoped, tag = 'scratch operand']
  %s0 = inlined_call_operand.hbm [shape: f32[8,256], index: 0, kind: input, shape index: {}]
  %s1 = inlined_call_operand.hbm [shape: f32[8,256], index: 1, kind: input, shape index: {}]
  %s2 = inlined_call_operand.hbm [shape: f32[8,8], index: 2, kind: output, shape index: {}]
  %s3 = sld [smem:[#allocation0]]
  $region34: #{tpu_custom_call.1} parent=0
    _
  %s5 = ssub.s32 1, %s3
  %s6 = scalar_select 0, %s5, %s3
  $region1: #{tpu_custom_call.1} parent=0
    #allocation3 [shape = 'u8[8192]{0}', space=vmem, size = 0x2000, scoped, tag = 'input window, operand 0, single buffered']
    #allocation4 [shape = 's32[1]{0}', space=sflag, size = 0x4, scoped, tag = 'scoped memory for tpu_custom_call.1']
    #allocation5 [shape = 's32[1]{0}', space=sflag, size = 0x4, scoped, tag = 'scoped memory for tpu_custom_call.1']
    #allocation6 [shape = 'u8[8192]{0}', space=vmem, size = 0x2000, scoped, tag = 'input window, operand 1, single buffered']
    #allocation7 [shape = 's32[1]{0}', space=sflag, size = 0x4, scoped, tag = 'scoped memory for tpu_custom_call.1']
    #allocation8 [shape = 'u8[4096]{0}', space=vmem, size = 0x1000, scoped, tag = 'output window, operand 0, single buffered']
    %7 = vsyncpa [#allocation4], 0
    %8 = vsyncpa [#allocation7], 0
    %9 = vsyncpa [#allocation5], 0
    // Predicated region
    $region2: #{tpu_custom_call.1} parent=1 // pred_check
      _
    $region3: #{tpu_custom_call.1} parent=1 // pred_check_branch
      %11 = sbr.rel (0) target = $region5
    $region4: #{tpu_custom_call.1} parent=1 // pred_region
      %13 = vsyncadd [#allocation4], 0
      %s15 = sshll.u32 %s0, 4
      %s16 = int_to_ptr.hbm [resolvable:$true] %s15
      %s17 = sshll.u32 [#allocation3], 4
      %s18 = int_to_ptr.vmem [resolvable:$true] %s17
      %20 = dma.hbm_to_vmem [thread:$0]  %s16, 256, %s18, [#allocation4]
    $region5: #{tpu_custom_call.1} parent=1 // pred_fallthru
      _
    // Predicated region
    $region6: #{tpu_custom_call.1} parent=1 // pred_check
      _
    $region7: #{tpu_custom_call.1} parent=1 // pred_check_branch
      %22 = sbr.rel (0) target = $region9
    $region8: #{tpu_custom_call.1} parent=1 // pred_region
      %24 = vsyncadd [#allocation7], 0
      %s26 = sshll.u32 %s1, 4
      %s27 = int_to_ptr.hbm [resolvable:$true] %s26
      %s28 = sshll.u32 [#allocation6], 4
      %s29 = int_to_ptr.vmem [resolvable:$true] %s28
      %31 = dma.hbm_to_vmem [thread:$0]  %s27, 256, %s29, [#allocation7]
    $region9: #{tpu_custom_call.1} parent=1 // pred_fallthru
      _
    // Predicated region
    $region10: #{tpu_custom_call.1} parent=1 // pred_check
      _
    $region11: #{tpu_custom_call.1} parent=1 // pred_check_branch
      %33 = sbr.rel (0) target = $region13
    $region12: #{tpu_custom_call.1} parent=1 // pred_region
      %35 = dma.done [#allocation4], 256
    $region13: #{tpu_custom_call.1} parent=1 // pred_fallthru
      _
    // Predicated region
    $region14: #{tpu_custom_call.1} parent=1 // pred_check
      _
    $region15: #{tpu_custom_call.1} parent=1 // pred_check_branch
      %37 = sbr.rel (0) target = $region17
    $region16: #{tpu_custom_call.1} parent=1 // pred_region
      %39 = dma.done [#allocation7], 256
    $region17: #{tpu_custom_call.1} parent=1 // pred_fallthru
      _
    %p40 = scmp.eq.s32.totalorder 0, 0
    // Predicated region
    $region18: #{tpu_custom_call.1} parent=1 // pred_check
      %p41 = pneg %p40
    $region19: #{tpu_custom_call.1} parent=1 // pred_check_branch
      %43 = sbr.rel (%p41) target = $region21
    $region20: #{tpu_custom_call.1} parent=1 // pred_region
      %vm44 = vcmask 64512
      %45 = vst.msk [vmem:[#allocation2] sm:$0xff] %vm44, 0.0
    $region21: #{tpu_custom_call.1} parent=1 // pred_fallthru
      _
    %v46 = vld [vmem:[#allocation2] sm:$0xff]
    %v47 = vld [vmem:[#allocation3] sm:$0xff]
    %v48 = vld [vmem:[#allocation3 + $0x8] sm:$0xff]
    %v49 = vld [vmem:[#allocation6] sm:$0xff]
    %v50 = vld [vmem:[#allocation6 + $0x8] sm:$0xff]
    %51 = vmatpush.xpose.msra.mxu0 0.0
    %52 = vmatpush.xpose.msra.mxu0 0.0
    %53 = vmatpush.xpose.msra.mxu0 0.0
    %54 = vmatpush.xpose.msra.mxu0 0.0
    %55 = vmatpush.xpose.msra.mxu0 0.0
    %56 = vmatpush.xpose.msra.mxu0 0.0
    %57 = vmatpush.xpose.msra.mxu0 0.0
    %58 = vmatpush.xpose.msra.mxu0 0.0
    %59 = vmatpush.xpose.msra.mxu0 0.0
    %60 = vmatpush.xpose.msra.mxu0 0.0
    %61 = vmatpush.xpose.msra.mxu0 0.0
    %62 = vmatpush.xpose.msra.mxu0 0.0
    %63 = vmatpush.xpose.msra.mxu0 0.0
    %64 = vmatpush.xpose.msra.mxu0 0.0
    %65 = vmatpush.xpose.msra.mxu0 0.0
    %66 = vmatpush.xpose.msra.mxu0 %v49
    %67 = vmatmul.f32.gmra.mxu0 %v47
    %v68 = vpop.f32.mrf.mxu0
    %v69 = vadd.f32 0.0, %v68
    %70 = vdwg.mxu0
    %71 = vmatpush.xpose.msra.mxu0 0.0
    %72 = vmatpush.xpose.msra.mxu0 0.0
    %73 = vmatpush.xpose.msra.mxu0 0.0
    %74 = vmatpush.xpose.msra.mxu0 0.0
    %75 = vmatpush.xpose.msra.mxu0 0.0
    %76 = vmatpush.xpose.msra.mxu0 0.0
    %77 = vmatpush.xpose.msra.mxu0 0.0
    %78 = vmatpush.xpose.msra.mxu0 0.0
    %79 = vmatpush.xpose.msra.mxu0 0.0
    %80 = vmatpush.xpose.msra.mxu0 0.0
    %81 = vmatpush.xpose.msra.mxu0 0.0
    %82 = vmatpush.xpose.msra.mxu0 0.0
    %83 = vmatpush.xpose.msra.mxu0 0.0
    %84 = vmatpush.xpose.msra.mxu0 0.0
    %85 = vmatpush.xpose.msra.mxu0 0.0
    %86 = vmatpush.xpose.msra.mxu0 %v50
    %87 = vmatmul.f32.gmra.mxu0 %v48
    %v88 = vpop.f32.mrf.mxu0
    %v89 = vadd.f32 %v69, %v88
    %90 = vdwg.mxu0
    %v91 = vadd.f32 %v46, %v89
    %vm92 = vcmask 64512
    %93 = vst.msk [vmem:[#allocation2] sm:$0xff] %vm92, %v91
    // Predicated region
    $region22: #{tpu_custom_call.1} parent=1 // pred_check
      %p94 = pneg %p40
    $region23: #{tpu_custom_call.1} parent=1 // pred_check_branch
      %96 = sbr.rel (%p94) target = $region25
    $region24: #{tpu_custom_call.1} parent=1 // pred_region
      %v97 = vld [vmem:[#allocation2] sm:$0xff]
      %v98 = vmul.f32 %v97, 0.00048828125
      %99 = vst.msk [vmem:[#allocation8] sm:$0xff] %vm92, %v98
    $region25: #{tpu_custom_call.1} parent=1 // pred_fallthru
      _
    // Predicated region
    $region26: #{tpu_custom_call.1} parent=1 // pred_check
      _
    $region27: #{tpu_custom_call.1} parent=1 // pred_check_branch
      %101 = sbr.rel (0) target = $region29
    $region28: #{tpu_custom_call.1} parent=1 // pred_region
      %103 = vsyncadd [#allocation5], 0
      %s105 = sshll.u32 [#allocation8], 4
      %s106 = int_to_ptr.vmem [resolvable:$true] %s105
      %s107 = sshll.u32 %s2, 4
      %s108 = int_to_ptr.hbm [resolvable:$true] %s107
      %110 = dma.vmem_to_hbm [thread:$0]  %s106, 128, %s108, [#allocation5]
    $region29: #{tpu_custom_call.1} parent=1 // pred_fallthru
      _
    // Predicated region
    $region30: #{tpu_custom_call.1} parent=1 // pred_check
      _
    $region31: #{tpu_custom_call.1} parent=1 // pred_check_branch
      %112 = sbr.rel (0) target = $region33
    $region32: #{tpu_custom_call.1} parent=1 // pred_region
      %114 = dma.done [#allocation5], 128
    $region33: #{tpu_custom_call.1} parent=1 // pred_fallthru
      _
    %115 = vsyncpa [#allocation4], 1
    %116 = vsyncpa [#allocation7], 1
    %117 = vsyncpa [#allocation5], 1

</llo_original>
